<compile_context>
chip_gen: v7x
topology: tpu7x:2x2x1
jax: 0.10.0
libtpu: 0.0.40
codegen_flags: <defaults>
</compile_context>

<pallas_src>
import math
import functools

import jax
import jax.numpy as jnp
from jax.experimental import pallas as pl
from jax.experimental.pallas import tpu as pltpu


def _round_up(n, m):
    return ((n + m - 1) // m) * m


def _policy_kernel(action_bound, x_ref, eps_ref, w1_ref, wh_ref, b_ref, out_ref):
    H = w1_ref.shape[1]            # hidden_dim
    A = eps_ref.shape[1]           # action_dim

    x = x_ref[...]                 # (TB, S)
    eps = eps_ref[...]             # (TB, A)
    b_all = b_ref[...]             # (1, H + 2A)
    b1 = b_all[:, :H]              # (1, H)
    bh = b_all[:, H:]              # (1, 2A)

    # fc1 + ReLU
    h = jnp.dot(x, w1_ref[...], preferred_element_type=jnp.float32) + b1
    h = jnp.maximum(h, 0.0)                                            # (TB, H)

    # fused mu/std heads: one MXU call, then static lane slices
    heads = jnp.dot(h, wh_ref[...], preferred_element_type=jnp.float32) + bh
    mu = heads[:, :A]                                                  # (TB, A)
    std_pre = heads[:, A:]                                             # (TB, A)

    # softplus(std_pre) + 1e-6  (numerically stable form)
    std = jnp.log1p(jnp.exp(-jnp.abs(std_pre))) + jnp.maximum(std_pre, 0.0)
    std = std + 1e-6

    # rsample + squash (reference scales by action_bound twice; kept faithfully)
    u = mu + std * eps
    tanh_u = jnp.tanh(u)
    action = tanh_u * action_bound

    # Normal(mu, std).log_prob(u) with z = eps (identical since u = mu+std*eps)
    half_log_2pi = 0.5 * math.log(2.0 * math.pi)
    log_prob = -0.5 * (eps * eps) - jnp.log(std) - half_log_2pi        # (TB, A)

    # tanh-squash correction on the already-scaled action (as in the reference)
    tanh_a = jnp.tanh(action)
    log_prob = log_prob - jnp.log(1.0 - tanh_a * tanh_a + 1e-7)
    log_prob = jnp.sum(log_prob, axis=-1, keepdims=True)               # (TB, 1)

    # single lane-contiguous store: [action*bound | log_prob]
    out_ref[...] = jnp.concatenate([action * action_bound, log_prob], axis=-1)


@functools.partial(jax.jit, static_argnames=("action_bound", "block_b"))
def policy_net_continuous(x, params, eps, action_bound, block_b=256):
    """SAC actor forward pass in one Pallas kernel, gridded over batch."""
    w1, b1, wmu, bmu, wstd, bstd = params
    B, S = x.shape
    H = w1.shape[1]
    A = wmu.shape[1]

    # Fuse head weights and all biases into single operands (5 inputs total).
    w_heads = jnp.concatenate([wmu, wstd], axis=1)        # (H, 2A)
    b_all = jnp.concatenate([b1, bmu, bstd], axis=1)      # (1, H + 2A)

    # Batch tile: multiple of 8 sublanes, capped at block_b; pad B to a multiple.
    TB = min(block_b, _round_up(B, 8))
    B_pad = _round_up(B, TB)
    if B_pad != B:
        pad = B_pad - B
        x = jnp.pad(x, ((0, pad), (0, 0)))
        eps = jnp.pad(eps, ((0, pad), (0, 0)))

    kernel = functools.partial(_policy_kernel, float(action_bound))

    out = pl.pallas_call(
        kernel,
        out_shape=jax.ShapeDtypeStruct((B_pad, A + 1), jnp.float32),
        grid=(B_pad // TB,),
        in_specs=[
            pl.BlockSpec((TB, S), lambda i: (i, 0)),          # x        (tiled)
            pl.BlockSpec((TB, A), lambda i: (i, 0)),          # eps      (tiled)
            pl.BlockSpec((S, H), lambda i: (0, 0)),           # w1       (resident)
            pl.BlockSpec((H, 2 * A), lambda i: (0, 0)),       # w_heads  (resident)
            pl.BlockSpec((1, H + 2 * A), lambda i: (0, 0)),   # b_all    (resident)
        ],
        out_specs=pl.BlockSpec((TB, A + 1), lambda i: (i, 0)),
        compiler_params=pltpu.CompilerParams(
            dimension_semantics=("parallel",),
            vmem_limit_bytes=32 * 1024 * 1024,
        ),
    )(x, eps, w1, w_heads, b_all)

    out = out[:B]
    return out[:, :A], out[:, A:]


def init_params(key, state_dim, hidden_dim, action_dim):
    """Parameter init mirroring the PyTorch module (weights stored as (in, out)).

    fc1: xavier_uniform weight, zero bias.  fc_mu / fc_std: PyTorch Linear
    default uniform(-1/sqrt(fan_in), 1/sqrt(fan_in))."""
    k1, k2, k3, k4, k5 = jax.random.split(key, 5)

    xav = math.sqrt(6.0 / (state_dim + hidden_dim))
    w1 = jax.random.uniform(k1, (state_dim, hidden_dim), jnp.float32, -xav, xav)
    b1 = jnp.zeros((1, hidden_dim), jnp.float32)

    lim = 1.0 / math.sqrt(hidden_dim)
    wmu = jax.random.uniform(k2, (hidden_dim, action_dim), jnp.float32, -lim, lim)
    bmu = jax.random.uniform(k3, (1, action_dim), jnp.float32, -lim, lim)
    wstd = jax.random.uniform(k4, (hidden_dim, action_dim), jnp.float32, -lim, lim)
    bstd = jax.random.uniform(k5, (1, action_dim), jnp.float32, -lim, lim)

    return (w1, b1, wmu, bmu, wstd, bstd)


def _reference(x, params, eps, action_bound):
    """Pure-JAX reference of the PyTorch forward (same double-scaling semantics)."""
    w1, b1, wmu, bmu, wstd, bstd = params
    h = jnp.maximum(x @ w1 + b1, 0.0)
    mu = h @ wmu + bmu
    std = jax.nn.softplus(h @ wstd + bstd) + 1e-6
    u = mu + std * eps
    action = jnp.tanh(u) * action_bound
    log_prob = -0.5 * eps * eps - jnp.log(std) - 0.5 * math.log(2.0 * math.pi)
    log_prob = log_prob - jnp.log(1.0 - jnp.tanh(action) ** 2 + 1e-7)
    return action * action_bound, jnp.sum(log_prob, axis=-1, keepdims=True)


if __name__ == "__main__":
    # Small shapes consistent with a SAC actor MLP.
    batch, state_dim, hidden_dim, action_dim = 8, 16, 32, 4
    action_bound = 2.0

    key = jax.random.PRNGKey(0)
    kx, keps, kp = jax.random.split(key, 3)

    x = jax.random.normal(kx, (batch, state_dim), jnp.float32)
    eps = jax.random.normal(keps, (batch, action_dim), jnp.float32)  # rsample noise
    params = init_params(kp, state_dim, hidden_dim, action_dim)

    action, log_prob = policy_net_continuous(x, params, eps, action_bound)
    jax.block_until_ready((action, log_prob))

    assert action.shape == (batch, action_dim)
    assert log_prob.shape == (batch, 1)
    assert bool(jnp.all(jnp.isfinite(action))) and bool(jnp.all(jnp.isfinite(log_prob)))

    ref_action, ref_logprob = _reference(x, params, eps, action_bound)
    assert bool(jnp.allclose(action, ref_action, atol=5e-2, rtol=5e-2))
    assert bool(jnp.allclose(log_prob, ref_logprob, atol=5e-2, rtol=5e-2))

    print("KERNEL_OK")
</pallas_src>

<mosaic_0001>
module attributes {stable_mosaic.version = 11 : i64} {
  func.func @_policy_kernel(%arg0: i32, %arg1: memref<8x16xf32, #tpu.memory_space<vmem>>, %arg2: memref<8x4xf32, #tpu.memory_space<vmem>>, %arg3: memref<16x32xf32, #tpu.memory_space<vmem>>, %arg4: memref<32x8xf32, #tpu.memory_space<vmem>>, %arg5: memref<1x40xf32, #tpu.memory_space<vmem>>, %arg6: memref<8x5xf32, #tpu.memory_space<vmem>>) attributes {dimension_semantics = [#tpu.dimension_semantics<parallel>], iteration_bounds = array<i64: 1>, scalar_prefetch = 0 : i64, scratch_operands = 0 : i64, tpu.core_type = #tpu.core_type<tc>, window_params = [{transform_indices = @transform_0, window_bounds = array<i64: 8, 16>}, {transform_indices = @transform_1, window_bounds = array<i64: 8, 4>}, {pipeline_mode = #tpu.pipeline_mode<synchronous>, transform_indices = @transform_2, window_bounds = array<i64: 16, 32>}, {pipeline_mode = #tpu.pipeline_mode<synchronous>, transform_indices = @transform_3, window_bounds = array<i64: 32, 8>}, {pipeline_mode = #tpu.pipeline_mode<synchronous>, transform_indices = @transform_4, window_bounds = array<i64: 1, 40>}, {transform_indices = @transform_5, window_bounds = array<i64: 8, 5>}]} {
    %c0 = arith.constant 0 : index
    %c0_0 = arith.constant 0 : index
    %0 = vector.load %arg1[%c0, %c0_0] : memref<8x16xf32, #tpu.memory_space<vmem>>, vector<8x16xf32>
    %c0_1 = arith.constant 0 : index
    %c0_2 = arith.constant 0 : index
    %1 = vector.load %arg2[%c0_1, %c0_2] : memref<8x4xf32, #tpu.memory_space<vmem>>, vector<8x4xf32>
    %c0_3 = arith.constant 0 : index
    %c0_4 = arith.constant 0 : index
    %2 = vector.load %arg5[%c0_3, %c0_4] : memref<1x40xf32, #tpu.memory_space<vmem>>, vector<1x40xf32>
    %3 = vector.extract_strided_slice %2 {offsets = [0, 0], sizes = [1, 32], strides = [1, 1]} : vector<1x40xf32> to vector<1x32xf32>
    %4 = vector.extract_strided_slice %2 {offsets = [0, 32], sizes = [1, 8], strides = [1, 1]} : vector<1x40xf32> to vector<1x8xf32>
    %c0_5 = arith.constant 0 : index
    %c0_6 = arith.constant 0 : index
    %5 = vector.load %arg3[%c0_5, %c0_6] : memref<16x32xf32, #tpu.memory_space<vmem>>, vector<16x32xf32>
    %cst = arith.constant dense<0.000000e+00> : vector<8x32xf32>
    %6 = tpu.matmul %0, %5, %cst {dimension_numbers = #tpu.dot_dimension_numbers<[1], [0], [0], [1], [0, 0, 1, 1], [], []>} : vector<8x16xf32>, vector<16x32xf32>, vector<8x32xf32> -> vector<8x32xf32>
    %7 = vector.broadcast %3 : vector<1x32xf32> to vector<8x32xf32>
    %8 = arith.addf %6, %7 : vector<8x32xf32>
    %cst_7 = arith.constant 0.000000e+00 : f32
    %9 = vector.broadcast %cst_7 : f32 to vector<8x32xf32>
    %10 = arith.maximumf %8, %9 : vector<8x32xf32>
    %c0_8 = arith.constant 0 : index
    %c0_9 = arith.constant 0 : index
    %11 = vector.load %arg4[%c0_8, %c0_9] : memref<32x8xf32, #tpu.memory_space<vmem>>, vector<32x8xf32>
    %cst_10 = arith.constant dense<0.000000e+00> : vector<8x8xf32>
    %12 = tpu.matmul %10, %11, %cst_10 {dimension_numbers = #tpu.dot_dimension_numbers<[1], [0], [0], [1], [0, 0, 1, 1], [], []>} : vector<8x32xf32>, vector<32x8xf32>, vector<8x8xf32> -> vector<8x8xf32>
    %13 = vector.broadcast %4 : vector<1x8xf32> to vector<8x8xf32>
    %14 = arith.addf %12, %13 : vector<8x8xf32>
    %15 = vector.extract_strided_slice %14 {offsets = [0, 0], sizes = [8, 4], strides = [1, 1]} : vector<8x8xf32> to vector<8x4xf32>
    %16 = vector.extract_strided_slice %14 {offsets = [0, 4], sizes = [8, 4], strides = [1, 1]} : vector<8x8xf32> to vector<8x4xf32>
    %17 = math.absf %16 : vector<8x4xf32>
    %cst_11 = arith.constant 0.000000e+00 : f32
    %18 = vector.broadcast %cst_11 : f32 to vector<8x4xf32>
    %19 = arith.subf %18, %17 : vector<8x4xf32>
    %20 = math.exp %19 : vector<8x4xf32>
    %21 = math.log1p %20 : vector<8x4xf32>
    %cst_12 = arith.constant 0.000000e+00 : f32
    %22 = vector.broadcast %cst_12 : f32 to vector<8x4xf32>
    %23 = arith.maximumf %16, %22 : vector<8x4xf32>
    %24 = arith.addf %21, %23 : vector<8x4xf32>
    %cst_13 = arith.constant 9.99999997E-7 : f32
    %25 = vector.broadcast %cst_13 : f32 to vector<8x4xf32>
    %26 = arith.addf %24, %25 : vector<8x4xf32>
    %27 = arith.mulf %26, %1 : vector<8x4xf32>
    %28 = arith.addf %15, %27 : vector<8x4xf32>
    %29 = math.tanh %28 : vector<8x4xf32>
    %cst_14 = arith.constant 2.000000e+00 : f32
    %30 = vector.broadcast %cst_14 : f32 to vector<8x4xf32>
    %31 = arith.mulf %29, %30 : vector<8x4xf32>
    %32 = arith.mulf %1, %1 : vector<8x4xf32>
    %cst_15 = arith.constant -5.000000e-01 : f32
    %33 = vector.broadcast %cst_15 : f32 to vector<8x4xf32>
    %34 = arith.mulf %33, %32 : vector<8x4xf32>
    %35 = math.log %26 : vector<8x4xf32>
    %36 = arith.subf %34, %35 : vector<8x4xf32>
    %cst_16 = arith.constant 0.918938517 : f32
    %37 = vector.broadcast %cst_16 : f32 to vector<8x4xf32>
    %38 = arith.subf %36, %37 : vector<8x4xf32>
    %39 = math.tanh %31 : vector<8x4xf32>
    %40 = arith.mulf %39, %39 : vector<8x4xf32>
    %cst_17 = arith.constant 1.000000e+00 : f32
    %41 = vector.broadcast %cst_17 : f32 to vector<8x4xf32>
    %42 = arith.subf %41, %40 : vector<8x4xf32>
    %cst_18 = arith.constant 1.000000e-07 : f32
    %43 = vector.broadcast %cst_18 : f32 to vector<8x4xf32>
    %44 = arith.addf %42, %43 : vector<8x4xf32>
    %45 = math.log %44 : vector<8x4xf32>
    %46 = arith.subf %38, %45 : vector<8x4xf32>
    %cst_19 = arith.constant dense<0.000000e+00> : vector<8xf32>
    %47 = vector.multi_reduction <add>, %46, %cst_19 [1] : vector<8x4xf32> to vector<8xf32>
    %48 = vector.shape_cast %47 : vector<8xf32> to vector<8x1xf32>
    %cst_20 = arith.constant 2.000000e+00 : f32
    %49 = vector.broadcast %cst_20 : f32 to vector<8x4xf32>
    %50 = arith.mulf %31, %49 : vector<8x4xf32>
    %51 = tpu.concatenate %50, %48 in 1 : vector<8x4xf32>, vector<8x1xf32> -> vector<8x5xf32>
    %c0_21 = arith.constant 0 : index
    %c0_22 = arith.constant 0 : index
    %52 = vector.load %arg6[%c0_21, %c0_22] : memref<8x5xf32, #tpu.memory_space<vmem>>, vector<8x5xf32>
    tpu.vector_store %arg6[%c0_21, %c0_22], %51 {strides = array<i32>} : memref<8x5xf32, #tpu.memory_space<vmem>>, vector<8x5xf32>,
    return
  }
  func.func @transform_0(%arg0: i32) -> (i32, i32) {
    %c0_i32 = arith.constant 0 : i32
    %c0_i32_0 = arith.constant 0 : i32
    return %arg0, %c0_i32 : i32, i32
  }
  func.func @transform_1(%arg0: i32) -> (i32, i32) {
    %c0_i32 = arith.constant 0 : i32
    %c0_i32_0 = arith.constant 0 : i32
    return %arg0, %c0_i32 : i32, i32
  }
  func.func @transform_2(%arg0: i32) -> (i32, i32) {
    %c0_i32 = arith.constant 0 : i32
    %c0_i32_0 = arith.constant 0 : i32
    %c0_i32_1 = arith.constant 0 : i32
    return %c0_i32, %c0_i32_0 : i32, i32
  }
  func.func @transform_3(%arg0: i32) -> (i32, i32) {
    %c0_i32 = arith.constant 0 : i32
    %c0_i32_0 = arith.constant 0 : i32
    %c0_i32_1 = arith.constant 0 : i32
    return %c0_i32, %c0_i32_0 : i32, i32
  }
  func.func @transform_4(%arg0: i32) -> (i32, i32) {
    %c0_i32 = arith.constant 0 : i32
    %c0_i32_0 = arith.constant 0 : i32
    %c0_i32_1 = arith.constant 0 : i32
    return %c0_i32, %c0_i32_0 : i32, i32
  }
  func.func @transform_5(%arg0: i32) -> (i32, i32) {
    %c0_i32 = arith.constant 0 : i32
    %c0_i32_0 = arith.constant 0 : i32
    return %arg0, %c0_i32 : i32, i32
  }
}

</mosaic_0001>

<llo_original>
// kernel: policy_net_continuous.1
$region0: #{policy_net_continuous.1}
  #allocation0 [shape = 'u32[]', space=smem, size = 0x4, offset = 0x4, fixed_abs, tag = 'smem constant byte address 0x4 - core index']
  #allocation1 [shape = 'u32[144,128]{1,0:T(1,128)}', space=vmem, size = 0x12000, scoped, tag = 'internal scratch']
  %s0 = inlined_call_operand.vmem [shape: f32[8,16], index: 0, kind: input, shape index: {}]
  %s1 = inlined_call_operand.vmem [shape: f32[8,4], index: 1, kind: input, shape index: {}]
  %s2 = inlined_call_operand.vmem [shape: f32[16,32], index: 2, kind: input, shape index: {}]
  %s3 = inlined_call_operand.vmem [shape: f32[32,8], index: 3, kind: input, shape index: {}]
  %s4 = inlined_call_operand.vmem [shape: f32[1,40], index: 4, kind: input, shape index: {}]
  %s5 = inlined_call_operand.vmem [shape: f32[8,5], index: 5, kind: output, shape index: {}]
  %s6 = sld [smem:[#allocation0]]
  $region30: #{policy_net_continuous.1} parent=0
    _
  %s8 = ssub.s32 1, %s6
  %s9 = scalar_select 0, %s8, %s6
  // Predicated region
  $region2: #{policy_net_continuous.1} parent=0 // pred_check
    _
  $region3: #{policy_net_continuous.1} parent=0 // pred_check_branch
    %11 = sbr.rel (0) target = $region5
  $region4: #{policy_net_continuous.1} parent=0 // pred_region
    _
  $region5: #{policy_net_continuous.1} parent=0 // pred_fallthru
    _
  // Predicated region
  $region6: #{policy_net_continuous.1} parent=0 // pred_check
    _
  $region7: #{policy_net_continuous.1} parent=0 // pred_check_branch
    %13 = sbr.rel (0) target = $region9
  $region8: #{policy_net_continuous.1} parent=0 // pred_region
    _
  $region9: #{policy_net_continuous.1} parent=0 // pred_fallthru
    _
  // Predicated region
  $region10: #{policy_net_continuous.1} parent=0 // pred_check
    _
  $region11: #{policy_net_continuous.1} parent=0 // pred_check_branch
    %15 = sbr.rel (0) target = $region13
  $region12: #{policy_net_continuous.1} parent=0 // pred_region
    _
  $region13: #{policy_net_continuous.1} parent=0 // pred_fallthru
    _
  // Predicated region
  $region14: #{policy_net_continuous.1} parent=0 // pred_check
    _
  $region15: #{policy_net_continuous.1} parent=0 // pred_check_branch
    %17 = sbr.rel (0) target = $region17
  $region16: #{policy_net_continuous.1} parent=0 // pred_region
    _
  $region17: #{policy_net_continuous.1} parent=0 // pred_fallthru
    _
  // Predicated region
  $region18: #{policy_net_continuous.1} parent=0 // pred_check
    _
  $region19: #{policy_net_continuous.1} parent=0 // pred_check_branch
    %19 = sbr.rel (0) target = $region21
  $region20: #{policy_net_continuous.1} parent=0 // pred_region
    _
  $region21: #{policy_net_continuous.1} parent=0 // pred_fallthru
    _
  %v20 = vld [vmem:[%s0] sm:$0xff]
  %v21 = vld [vmem:[%s1] sm:$0xff]
  %v22 = vld [vmem:[%s4] sm:$0x1]
  %v23 = vld [vmem:[%s2] sm:$0xff]
  %v24 = vld [vmem:[%s2 + $0x8] sm:$0xff]
  %v26 = vlaneseq
  %v27 = vshrl.u32 %v26, 7
  %v28 = vsub.s32 0, %v27
  %v29 = vrot.slane %v22, %v28
  %vm31 = vcmask 130048
  %v33 = vsel %vm31, %v20, 0
  %35 = vmatprep.subr.mxu0 0.0
  %36 = vmatpush1.msra.mxu0 %v23
  %37 = vmatprep.subr.mxu0 0.0
  %38 = vmatpush1.msra.mxu0 %v24
  %39 = vmatprep.subr.mxu0 0.0
  %40 = vmatpush1.msra.mxu0 0.0
  %41 = vmatprep.subr.mxu0 0.0
  %42 = vmatpush1.msra.mxu0 0.0
  %43 = vmatprep.subr.mxu0 0.0
  %44 = vmatpush1.msra.mxu0 0.0
  %45 = vmatprep.subr.mxu0 0.0
  %46 = vmatpush1.msra.mxu0 0.0
  %47 = vmatprep.subr.mxu0 0.0
  %48 = vmatpush1.msra.mxu0 0.0
  %49 = vmatprep.subr.mxu0 0.0
  %50 = vmatpush1.msra.mxu0 0.0
  %51 = vmatprep.subr.mxu0 0.0
  %52 = vmatpush1.msra.mxu0 0.0
  %53 = vmatprep.subr.mxu0 0.0
  %54 = vmatpush1.msra.mxu0 0.0
  %55 = vmatprep.subr.mxu0 0.0
  %56 = vmatpush1.msra.mxu0 0.0
  %57 = vmatprep.subr.mxu0 0.0
  %58 = vmatpush1.msra.mxu0 0.0
  %59 = vmatprep.subr.mxu0 0.0
  %60 = vmatpush1.msra.mxu0 0.0
  %61 = vmatprep.subr.mxu0 0.0
  %62 = vmatpush1.msra.mxu0 0.0
  %63 = vmatprep.subr.mxu0 0.0
  %64 = vmatpush1.msra.mxu0 0.0
  %65 = vmatprep.subr.mxu0 0.0
  %66 = vmatpush1.msra.mxu0 0.0
  %67 = vmatprep.subr.mxu0 0.0
  %68 = vmatpush1.msra.mxu0 0.0
  %69 = vmatprep.subr.mxu0 0.0
  %70 = vmatpush1.msra.mxu0 0.0
  %71 = vmatprep.subr.mxu0 0.0
  %72 = vmatpush1.msra.mxu0 0.0
  %73 = vmatprep.subr.mxu0 0.0
  %74 = vmatpush1.msra.mxu0 0.0
  %75 = vmatprep.subr.mxu0 0.0
  %76 = vmatpush1.msra.mxu0 0.0
  %77 = vmatprep.subr.mxu0 0.0
  %78 = vmatpush1.msra.mxu0 0.0
  %79 = vmatprep.subr.mxu0 0.0
  %80 = vmatpush1.msra.mxu0 0.0
  %81 = vmatprep.subr.mxu0 0.0
  %82 = vmatpush1.msra.mxu0 0.0
  %83 = vmatprep.subr.mxu0 0.0
  %84 = vmatpush1.msra.mxu0 0.0
  %85 = vmatprep.subr.mxu0 0.0
  %86 = vmatpush1.msra.mxu0 0.0
  %87 = vmatprep.subr.mxu0 0.0
  %88 = vmatpush1.msra.mxu0 0.0
  %89 = vmatprep.subr.mxu0 0.0
  %90 = vmatpush1.msra.mxu0 0.0
  %91 = vmatprep.subr.mxu0 0.0
  %92 = vmatpush1.msra.mxu0 0.0
  %93 = vmatprep.subr.mxu0 0.0
  %94 = vmatpush1.msra.mxu0 0.0
  %95 = vmatprep.subr.mxu0 0.0
  %96 = vmatpush1.msra.mxu0 0.0
  %97 = vmatprep.subr.mxu0 0.0
  %98 = vmatpush1.msra.mxu0 0.0
  %99 = vmatprep.mubr.f32.mxu0 0.0
  %100 = vmatmul.mubr.f32.gmra.mrb[0].mxu0 %v33
  %v101 = vpop.f32.mrb[0].mxu0
  %v102 = vadd.f32 %v29, %v101
  %v103 = vpop.f32.mrb[0].mxu0
  %104 = vdwg.mxu0
  %v105 = vmax.f32 %v102, 0.0
  %v106 = vld [vmem:[%s3] sm:$0xff]
  %v107 = vld [vmem:[%s3 + $0x8] sm:$0xff]
  %v108 = vld [vmem:[%s3 + $0x10] sm:$0xff]
  %v109 = vld [vmem:[%s3 + $0x18] sm:$0xff]
  %110 = vrot.lane.b32.xlu0 %v29, 96
  %v111 = vpop.permute.xlu0 %110
  %vm113 = vcmask 261120
  %v115 = vsel %vm113, %v105, 0
  %117 = vmatprep.subr.mxu0 0.0
  %118 = vmatpush1.msra.mxu0 %v106
  %119 = vmatprep.subr.mxu0 0.0
  %120 = vmatpush1.msra.mxu0 %v107
  %121 = vmatprep.subr.mxu0 0.0
  %122 = vmatpush1.msra.mxu0 %v108
  %123 = vmatprep.subr.mxu0 0.0
  %124 = vmatpush1.msra.mxu0 %v109
  %125 = vmatprep.subr.mxu0 0.0
  %126 = vmatpush1.msra.mxu0 0.0
  %127 = vmatprep.subr.mxu0 0.0
  %128 = vmatpush1.msra.mxu0 0.0
  %129 = vmatprep.subr.mxu0 0.0
  %130 = vmatpush1.msra.mxu0 0.0
  %131 = vmatprep.subr.mxu0 0.0
  %132 = vmatpush1.msra.mxu0 0.0
  %133 = vmatprep.subr.mxu0 0.0
  %134 = vmatpush1.msra.mxu0 0.0
  %135 = vmatprep.subr.mxu0 0.0
  %136 = vmatpush1.msra.mxu0 0.0
  %137 = vmatprep.subr.mxu0 0.0
  %138 = vmatpush1.msra.mxu0 0.0
  %139 = vmatprep.subr.mxu0 0.0
  %140 = vmatpush1.msra.mxu0 0.0
  %141 = vmatprep.subr.mxu0 0.0
  %142 = vmatpush1.msra.mxu0 0.0
  %143 = vmatprep.subr.mxu0 0.0
  %144 = vmatpush1.msra.mxu0 0.0
  %145 = vmatprep.subr.mxu0 0.0
  %146 = vmatpush1.msra.mxu0 0.0
  %147 = vmatprep.subr.mxu0 0.0
  %148 = vmatpush1.msra.mxu0 0.0
  %149 = vmatprep.subr.mxu0 0.0
  %150 = vmatpush1.msra.mxu0 0.0
  %151 = vmatprep.subr.mxu0 0.0
  %152 = vmatpush1.msra.mxu0 0.0
  %153 = vmatprep.subr.mxu0 0.0
  %154 = vmatpush1.msra.mxu0 0.0
  %155 = vmatprep.subr.mxu0 0.0
  %156 = vmatpush1.msra.mxu0 0.0
  %157 = vmatprep.subr.mxu0 0.0
  %158 = vmatpush1.msra.mxu0 0.0
  %159 = vmatprep.subr.mxu0 0.0
  %160 = vmatpush1.msra.mxu0 0.0
  %161 = vmatprep.subr.mxu0 0.0
  %162 = vmatpush1.msra.mxu0 0.0
  %163 = vmatprep.subr.mxu0 0.0
  %164 = vmatpush1.msra.mxu0 0.0
  %165 = vmatprep.subr.mxu0 0.0
  %166 = vmatpush1.msra.mxu0 0.0
  %167 = vmatprep.subr.mxu0 0.0
  %168 = vmatpush1.msra.mxu0 0.0
  %169 = vmatprep.subr.mxu0 0.0
  %170 = vmatpush1.msra.mxu0 0.0
  %171 = vmatprep.subr.mxu0 0.0
  %172 = vmatpush1.msra.mxu0 0.0
  %173 = vmatprep.subr.mxu0 0.0
  %174 = vmatpush1.msra.mxu0 0.0
  %175 = vmatprep.subr.mxu0 0.0
  %176 = vmatpush1.msra.mxu0 0.0
  %177 = vmatprep.subr.mxu0 0.0
  %178 = vmatpush1.msra.mxu0 0.0
  %179 = vmatprep.subr.mxu0 0.0
  %180 = vmatpush1.msra.mxu0 0.0
  %181 = vmatprep.mubr.f32.mxu0 0.0
  %182 = vmatmul.mubr.f32.gmra.mrb[0].mxu0 %v115
  %v183 = vpop.f32.mrb[0].mxu0
  %v184 = vadd.f32 %v111, %v183
  %v185 = vpop.f32.mrb[0].mxu0
  %186 = vdwg.mxu0
  %v187 = vand.u32 2147483647, %v184
  %v188 = vsub.f32 0.0, %v187
  %v189 = vmul.f32 %v188, 1.442695
  %v190 = vpow.pop %v189
  %v191 = vadd.f32 %v190, 1.0
  %v192 = vlog2.pop %v191
  %v193 = vmul.f32 %v192, 0.6931472
  %v194 = vmul.f32 -0.5, %v190
  %v195 = vadd.f32 %v194, 1.0
  %v196 = vmul.f32 %v195, %v190
  %v197 = vand.u32 2147483647, %v190
  %vm198 = vcmp.lt.f32.partialorder %v197, 0.0004427343
  %v199 = vsel %vm198, %v196, %v193
  %v200 = vmax.f32 %v184, 0.0
  %v201 = vadd.f32 %v199, %v200
  %v202 = vadd.f32 %v201, 1e-06
  %204 = vrot.lane.b32.xlu0 %v21, 4
  %v205 = vpop.permute.xlu0 %204
  %v207 = vmul.f32 %v202, %v205
  %209 = vrot.lane.b32.xlu0 %v207, 124
  %v210 = vpop.permute.xlu0 %209
  %v212 = vadd.f32 %v184, %v210
  %v213 = vtanh.pop %v212
  %v214 = vmul.f32 %v213, 2.0
  %v215 = vmul.f32 %v21, %v21
  %v216 = vmul.f32 %v215, -0.5
  %v217 = vlog2.pop %v202
  %v218 = vmul.f32 %v217, 0.6931472
  %220 = vrot.lane.b32.xlu0 %v218, 124
  %v221 = vpop.permute.xlu0 %220
  %v223 = vsub.f32 %v216, %v221
  %v224 = vsub.f32 %v223, 0.9189385
  %v225 = vtanh.pop %v214
  %v226 = vmul.f32 %v225, %v225
  %v227 = vsub.f32 1.0, %v226
  %v228 = vadd.f32 %v227, 1e-07
  %v229 = vlog2.pop %v228
  %v230 = vmul.f32 %v229, 0.6931472
  %v231 = vsub.f32 %v224, %v230
  %vm232 = vcmask 31744
  %v233 = vsel %vm232, %v231, 0.0
  %234 = vadd.xlane.f32.xlu0 %v233
  %v235 = vpop.xlane.xlu0 %234
  %v236 = vmul.f32 %v214, 2.0
  %v237 = vsel %vm232, %v236, %v235
  %vm238 = vcmask 39936
  %239 = vst.msk [vmem:[%s5] sm:$0xff] %vm238, %v237
  // Predicated region
  $region22: #{policy_net_continuous.1} parent=0 // pred_check
    _
  $region23: #{policy_net_continuous.1} parent=0 // pred_check_branch
    %241 = sbr.rel (0) target = $region25
  $region24: #{policy_net_continuous.1} parent=0 // pred_region
    _
  $region25: #{policy_net_continuous.1} parent=0 // pred_fallthru
    _
  // Predicated region
  $region26: #{policy_net_continuous.1} parent=0 // pred_check
    _
  $region27: #{policy_net_continuous.1} parent=0 // pred_check_branch
    %243 = sbr.rel (0) target = $region29
  $region28: #{policy_net_continuous.1} parent=0 // pred_region
    _
  $region29: #{policy_net_continuous.1} parent=0 // pred_fallthru
    _

</llo_original>
